<compile_context>
chip_gen: v7x
topology: tpu7x:2x2x1
jax: 0.10.0
libtpu: 0.0.40
codegen_flags: <defaults>
</compile_context>

<pallas_src>
import jax
import jax.numpy as jnp
from jax import lax
from jax.experimental import pallas as pl
from jax.experimental.pallas import tpu as pltpu

EPS = 1e-30                                   # matches F.cosine_similarity eps
_TINY = float(jnp.finfo(jnp.float32).tiny)    # clamp for rsqrt of ||x||^2


def _round_up(a, b):
    return (a + b - 1) // b * b


def _tpu_vmem_capacity():
    """Per-core VMEM bytes; conservative (v7x) fallback if the query fails."""
    try:
        return int(pltpu.get_tpu_info().vmem_capacity_bytes)
    except Exception:
        return 64 * 1024 * 1024


def _choose_tile_p(P, C, O, N, vmem_cap):
    """Lane tile (multiple of 128): big enough to amortize the ~0.35us per-step
    overhead (cap 32768), small enough that the double-buffered in+out tiles
    fit ~vmem_cap/4, and split so dual-TC chips (v7x) get >= 2 grid steps."""
    budget = vmem_cap // 4                       # bytes for 2x (in + out) tile
    lane_bytes = (C + O) * 4                     # f32 bytes per lane column
    tp = (budget // (2 * lane_bytes)) // 128 * 128
    tp = max(128, min(int(tp), 32768))
    tp = min(tp, _round_up(P, 128))              # never bigger than needed
    if N * pl.cdiv(P, tp) < 2 and tp > 128:      # give both v7x TCs a step
        tp = max(128, _round_up(pl.cdiv(P, 2), 128))
    return int(tp)


def _kernel(x_ref, w_ref, o_ref):
    # x_ref: (1, C, TP); w_ref: (O, C) already scaled by 1/max(||w_o||, eps).
    x = x_ref[0].astype(jnp.float32)                              # (C, TP)
    w = w_ref[...].astype(jnp.float32)                            # (O, C)
    dot = jnp.dot(w, x, preferred_element_type=jnp.float32)       # (O, TP) MXU
    xn2 = jnp.sum(x * x, axis=0, keepdims=True)                   # (1, TP)
    inv_x = lax.rsqrt(jnp.maximum(xn2, _TINY))                    # (1, TP) EUP
    o_ref[0] = (dot * inv_x).astype(o_ref.dtype)


def distanceminimi_forward(x, omega):
    """x: (N, C, H, W); omega: (1, O, C, 1, 1) -> ((N, O, H, W), omega)."""
    N, C, H, W = x.shape
    O = omega.shape[1]
    P = H * W

    # Hoisted + folded weight norm (done once, O(O*C)):
    #   w_scaled[o, c] = omega[o, c] / max(||omega_o||, eps)
    w_mat = omega.reshape(O, C).astype(jnp.float32)                    # (O, C)
    w_norm = jnp.sqrt(jnp.sum(w_mat * w_mat, axis=1, keepdims=True))   # (O, 1)
    w_scaled = w_mat / jnp.maximum(w_norm, EPS)                        # (O, C)

    vmem_cap = _tpu_vmem_capacity()
    tp = _choose_tile_p(P, C, O, N, vmem_cap)
    grid = (N, pl.cdiv(P, tp))

    # No jnp.pad / output slice: partial edge blocks are padded on input and
    # masked on store by Pallas (each output column depends only on its own
    # input column, so edge garbage never contaminates valid lanes).
    x_flat = x.reshape(N, C, P)

    cost = pl.CostEstimate(
        flops=2 * N * O * C * P + 2 * N * C * P,
        transcendentals=N * P,
        bytes_accessed=(N * (C + O) * P + O * C) * 4,
    )

    # Double-buffered x + out tiles plus the small resident scaled weights.
    est_vmem = 2 * (C + O) * tp * 4 + O * C * 4
    vmem_ceiling = min(vmem_cap // 2, 64 * 1024 * 1024)   # 32 MiB on v7x
    vmem_limit = int(min(vmem_ceiling, max(2 * est_vmem, 16 * 1024 * 1024)))

    out_flat = pl.pallas_call(
        _kernel,
        out_shape=jax.ShapeDtypeStruct((N, O, P), x.dtype),
        grid_spec=pltpu.PrefetchScalarGridSpec(
            num_scalar_prefetch=0,
            grid=grid,
            in_specs=[
                pl.BlockSpec((1, C, tp), lambda n, p: (n, 0, p)),
                pl.BlockSpec((O, C), lambda n, p: (0, 0)),
            ],
            out_specs=pl.BlockSpec((1, O, tp), lambda n, p: (n, 0, p)),
        ),
        compiler_params=pltpu.CompilerParams(
            dimension_semantics=("parallel", "parallel"),
            vmem_limit_bytes=vmem_limit,
        ),
        cost_estimate=cost,
    )(x_flat, w_scaled)

    return out_flat.reshape(N, O, H, W), omega


def _reference(x, omega):
    x5 = x[:, None, :, :, :]                       # (N, 1, C, H, W)
    dot = jnp.sum(x5 * omega, axis=2)              # (N, O, H, W)
    xn = jnp.sqrt(jnp.sum(x5 * x5, axis=2))        # (N, 1, H, W)
    wn = jnp.sqrt(jnp.sum(omega * omega, axis=2))  # (1, O, 1, 1)
    return dot / jnp.maximum(xn * wn, EPS)


if __name__ == "__main__":
    fwd = jax.jit(distanceminimi_forward)
    key = jax.random.PRNGKey(0)
    k1, k2, k3, k4, k5 = jax.random.split(key, 5)

    # Config 1: module-like toy shapes (exact spatial tiling).
    N, C, O, H, W = 2, 4, 8, 16, 16
    x = jax.random.normal(k1, (N, C, H, W), dtype=jnp.float32)
    omega = jax.random.normal(k2, (1, O, C, 1, 1), dtype=jnp.float32)
    out, omega_out = fwd(x, omega)
    out = jax.block_until_ready(out)
    ref = _reference(x, omega)
    assert out.shape == (N, O, H, W)
    assert omega_out.shape == (1, O, C, 1, 1)
    assert jnp.allclose(out, ref, atol=5e-4, rtol=5e-4), "mismatch (config 1)"

    # Config 2: larger channels + non-128-multiple spatial -> partial edge block.
    N2, C2, O2, H2, W2 = 2, 64, 64, 10, 10
    x2 = jax.random.normal(k3, (N2, C2, H2, W2), dtype=jnp.float32)
    omega2 = jax.random.normal(k4, (1, O2, C2, 1, 1), dtype=jnp.float32)
    out2, _ = fwd(x2, omega2)
    out2 = jax.block_until_ready(out2)
    ref2 = _reference(x2, omega2)
    assert out2.shape == (N2, O2, H2, W2)
    assert jnp.allclose(out2, ref2, atol=5e-4, rtol=5e-4), "mismatch (config 2)"

    # Config 3: N == 1 -> tile is split so a dual-TC chip gets 2 grid steps.
    N3, C3, O3, H3, W3 = 1, 4, 8, 16, 16
    x3 = jax.random.normal(k5, (N3, C3, H3, W3), dtype=jnp.float32)
    out3, _ = fwd(x3, omega)
    out3 = jax.block_until_ready(out3)
    ref3 = _reference(x3, omega)
    assert out3.shape == (N3, O3, H3, W3)
    assert jnp.allclose(out3, ref3, atol=5e-4, rtol=5e-4), "mismatch (config 3)"

    print("KERNEL_OK")
</pallas_src>

<mosaic_0001>
module attributes {stable_mosaic.version = 11 : i64} {
  func.func @_kernel(%arg0: i32, %arg1: i32, %arg2: memref<1x4x256xf32, #tpu.memory_space<vmem>>, %arg3: memref<8x4xf32, #tpu.memory_space<vmem>>, %arg4: memref<1x8x256xf32, #tpu.memory_space<vmem>>) attributes {dimension_semantics = [#tpu.dimension_semantics<parallel>, #tpu.dimension_semantics<parallel>], iteration_bounds = array<i64: 2, 1>, scalar_prefetch = 0 : i64, scratch_operands = 0 : i64, tpu.core_type = #tpu.core_type<tc>, window_params = [{transform_indices = @transform_0, window_bounds = array<i64: 1, 4, 256>}, {pipeline_mode = #tpu.pipeline_mode<synchronous>, transform_indices = @transform_1, window_bounds = array<i64: 8, 4>}, {transform_indices = @transform_2, window_bounds = array<i64: 1, 8, 256>}]} {
    %c0 = arith.constant 0 : index
    %c0_0 = arith.constant 0 : index
    %c0_1 = arith.constant 0 : index
    %0 = vector.load %arg2[%c0, %c0_0, %c0_1] : memref<1x4x256xf32, #tpu.memory_space<vmem>>, vector<1x4x256xf32>
    %1 = vector.shape_cast %0 : vector<1x4x256xf32> to vector<4x256xf32>
    %c0_2 = arith.constant 0 : index
    %c0_3 = arith.constant 0 : index
    %2 = vector.load %arg3[%c0_2, %c0_3] : memref<8x4xf32, #tpu.memory_space<vmem>>, vector<8x4xf32>
    %cst = arith.constant dense<0.000000e+00> : vector<8x256xf32>
    %3 = tpu.matmul %2, %1, %cst {dimension_numbers = #tpu.dot_dimension_numbers<[1], [0], [0], [1], [0, 0, 1, 1], [], []>} : vector<8x4xf32>, vector<4x256xf32>, vector<8x256xf32> -> vector<8x256xf32>
    %4 = arith.mulf %1, %1 : vector<4x256xf32>
    %cst_4 = arith.constant dense<0.000000e+00> : vector<256xf32>
    %5 = vector.multi_reduction <add>, %4, %cst_4 [0] : vector<4x256xf32> to vector<256xf32>
    %6 = vector.shape_cast %5 : vector<256xf32> to vector<1x256xf32>
    %cst_5 = arith.constant 1.17549435E-38 : f32
    %7 = vector.broadcast %cst_5 : f32 to vector<1x256xf32>
    %8 = arith.maximumf %6, %7 : vector<1x256xf32>
    %9 = math.rsqrt %8 : vector<1x256xf32>
    %10 = vector.broadcast %9 : vector<1x256xf32> to vector<8x256xf32>
    %11 = arith.mulf %3, %10 : vector<8x256xf32>
    %c0_6 = arith.constant 0 : index
    %c0_7 = arith.constant 0 : index
    %c0_8 = arith.constant 0 : index
    %12 = vector.load %arg4[%c0_6, %c0_7, %c0_8] : memref<1x8x256xf32, #tpu.memory_space<vmem>>, vector<1x8x256xf32>
    %13 = vector.shape_cast %12 : vector<1x8x256xf32> to vector<8x256xf32>
    %14 = vector.shape_cast %11 : vector<8x256xf32> to vector<1x8x256xf32>
    tpu.vector_store %arg4[%c0_6, %c0_7, %c0_8], %14 {strides = array<i32>} : memref<1x8x256xf32, #tpu.memory_space<vmem>>, vector<1x8x256xf32>,
    return
  }
  func.func @transform_0(%arg0: i32, %arg1: i32) -> (i32, i32, i32) {
    %c0_i32 = arith.constant 0 : i32
    %c0_i32_0 = arith.constant 0 : i32
    return %arg0, %c0_i32, %arg1 : i32, i32, i32
  }
  func.func @transform_1(%arg0: i32, %arg1: i32) -> (i32, i32) {
    %c0_i32 = arith.constant 0 : i32
    %c0_i32_0 = arith.constant 0 : i32
    %c0_i32_1 = arith.constant 0 : i32
    return %c0_i32, %c0_i32_0 : i32, i32
  }
  func.func @transform_2(%arg0: i32, %arg1: i32) -> (i32, i32, i32) {
    %c0_i32 = arith.constant 0 : i32
    %c0_i32_0 = arith.constant 0 : i32
    return %arg0, %c0_i32, %arg1 : i32, i32, i32
  }
}

</mosaic_0001>

<llo_original>
// kernel: distanceminimi_forward.1
$region0: #{distanceminimi_forward.1}
  #allocation0 [shape = 'u32[]', space=smem, size = 0x4, offset = 0x4, fixed_abs, tag = 'smem constant byte address 0x4 - core index']
  #allocation1 [shape = 'u32[144,128]{1,0:T(1,128)}', space=vmem, size = 0x12000, scoped, tag = 'internal scratch']
  %s0 = inlined_call_operand.vmem [shape: f32[2,4,256], index: 0, kind: input, shape index: {}]
  %s1 = inlined_call_operand.vmem [shape: f32[8,4], index: 1, kind: input, shape index: {}]
  %s2 = inlined_call_operand.vmem [shape: f32[2,8,256], index: 2, kind: output, shape index: {}]
  %s3 = sld [smem:[#allocation0]]
  $region41: #{distanceminimi_forward.1} parent=0
    _
  %s5 = ssub.s32 1, %s3
  %s6 = scalar_select 0, %s5, %s3
  loop: start=0, step=1, limit=4
  $region2: #{distanceminimi_forward.1} parent=0 // loop_pre_header
    _
  $region3: #{distanceminimi_forward.1} parent=0 // loop_header
    %s8 = sphi 0, %s12
    %p9 = scmp.ge.s32.totalorder %s8, 4
    %s15 = sphi 0, %s27
    %s16 = sphi 0, %s23
    %s17 = sphi 0, %s15
    %s18 = sphi 0, %s16
    %s19 = sphi 0, %s17
    %s20 = sphi 0, %s18
    %s32 = sphi 0, %s34
    %s35 = sphi 0, %s32
    %s36 = sphi 0, %s35
    %s52 = sphi 0, %s36
    %s56 = sphi 0, %s56
    %s58 = sphi 0, %s56
    %s59 = sphi 0, %s58
    %s73 = sphi 0, %s59
    %s81 = sphi 0, %s83
    %s84 = sphi 0, %s81
    %s85 = sphi 0, %s84
    %s101 = sphi 0, %s85
  $region4: #{distanceminimi_forward.1} parent=0 // loop_header_branch
    %11 = sbr.rel (%p9) target = $region8
  $region5: #{distanceminimi_forward.1} parent=0 // loop_body
    %s13 = ssub.s32 %s8, 1
    %s14 = ssub.s32 %s8, 2
    %s21 = sadd.s32 1, %s16
    %p22 = scmp.ge.s32.totalorder %s21, 1
    %s23 = scalar_select %p22, 0, %s21
    %s24 = sadd.s32 1, %s15
    %s25 = scalar_select %p22, %s24, %s15
    %p26 = scmp.ge.s32.totalorder %s25, 2
    %s27 = scalar_select %p26, 0, %s25
    %s28 = ssub.s32 %s15, %s27
    %s29 = ssub.s32 %s16, %s23
    %s30 = sor.u32 %s28, %s29
    %p31 = scmp.eq.s32.totalorder %s30, 0
    %s33 = sadd.s32 %s32, 1
    %s34 = scalar_select %p31, %s32, %s33
    %p37 = pneg %p31
    %p38 = scmp.eq.s32.totalorder %s8, 1
    %p39 = por %p37, %p38
    %p40 = scmp.ne.s32.totalorder %s32, %s35
    %p41 = scmp.eq.s32.totalorder %s8, 0
    %p42 = por %p40, %p41
    %p43 = scmp.ne.s32.totalorder %s32, %s35
    %p44 = scmp.eq.s32.totalorder %s13, 1
    %p45 = por %p43, %p44
    %p46 = scmp.ne.s32.totalorder %s35, %s36
    %p47 = scmp.eq.s32.totalorder %s13, 0
    %p48 = por %p46, %p47
    %p49 = scmp.ne.s32.totalorder %s35, %s36
    %p50 = scmp.eq.s32.totalorder %s14, 1
    %p51 = por %p49, %p50
    %p53 = scmp.ne.s32.totalorder %s36, %s52
    %p54 = scmp.eq.s32.totalorder %s14, 0
    %p55 = por %p53, %p54
    %s57 = sadd.s32 %s56, 1
    %p60 = scmp.eq.s32.totalorder %s8, 1
    %p61 = scmp.ne.s32.totalorder %s56, %s58
    %p62 = scmp.eq.s32.totalorder %s8, 0
    %p63 = por %p61, %p62
    %p64 = scmp.ne.s32.totalorder %s56, %s58
    %p65 = scmp.eq.s32.totalorder %s13, 1
    %p66 = por %p64, %p65
    %p67 = scmp.ne.s32.totalorder %s58, %s59
    %p68 = scmp.eq.s32.totalorder %s13, 0
    %p69 = por %p67, %p68
    %p70 = scmp.ne.s32.totalorder %s58, %s59
    %p71 = scmp.eq.s32.totalorder %s14, 1
    %p72 = por %p70, %p71
    %p74 = scmp.ne.s32.totalorder %s59, %s73
    %p75 = scmp.eq.s32.totalorder %s14, 0
    %p76 = por %p74, %p75
    %s77 = ssub.s32 %s15, %s27
    %s78 = ssub.s32 %s16, %s23
    %s79 = sor.u32 %s77, %s78
    %p80 = scmp.eq.s32.totalorder %s79, 0
    %s82 = sadd.s32 %s81, 1
    %s83 = scalar_select %p80, %s81, %s82
    %p86 = pneg %p80
    %p87 = scmp.eq.s32.totalorder %s8, 1
    %p88 = por %p86, %p87
    %p89 = scmp.ne.s32.totalorder %s81, %s84
    %p90 = scmp.eq.s32.totalorder %s8, 0
    %p91 = por %p89, %p90
    %p92 = scmp.ne.s32.totalorder %s81, %s84
    %p93 = scmp.eq.s32.totalorder %s13, 1
    %p94 = por %p92, %p93
    %p95 = scmp.ne.s32.totalorder %s84, %s85
    %p96 = scmp.eq.s32.totalorder %s13, 0
    %p97 = por %p95, %p96
    %p98 = scmp.ne.s32.totalorder %s84, %s85
    %p99 = scmp.eq.s32.totalorder %s14, 1
    %p100 = por %p98, %p99
    %p102 = scmp.ne.s32.totalorder %s85, %s101
    %p103 = scmp.eq.s32.totalorder %s14, 0
    %p104 = por %p102, %p103
    %p105 = scmp.le.s32.totalorder 1, %s8
    %p106 = scmp.lt.s32.totalorder %s8, 3
    %p107 = pnand %p105, %p106
    %p108 = pneg %p107
    // Predicated region
    $region9: #{distanceminimi_forward.1} parent=5 // pred_check
      _
    $region10: #{distanceminimi_forward.1} parent=5 // pred_check_branch
      %110 = sbr.rel (%p107) target = $region12
    $region11: #{distanceminimi_forward.1} parent=5 // pred_region
      %s111 = ssub.s32 %s8, 1
      // Predicated region
      $region13: #{distanceminimi_forward.1} parent=11 // pred_check
        %p112 = pneg %p69
      $region14: #{distanceminimi_forward.1} parent=11 // pred_check_branch
        %114 = sbr.rel (%p112) target = $region16
      $region15: #{distanceminimi_forward.1} parent=11 // pred_region
        _
      $region16: #{distanceminimi_forward.1} parent=11 // pred_fallthru
        _
    $region12: #{distanceminimi_forward.1} parent=5 // pred_fallthru
      _
    %p115 = scmp.lt.s32.totalorder %s8, 2
    // Predicated region
    $region17: #{distanceminimi_forward.1} parent=5 // pred_check
      %p116 = pneg %p115
    $region18: #{distanceminimi_forward.1} parent=5 // pred_check_branch
      %118 = sbr.rel (%p116) target = $region20
    $region19: #{distanceminimi_forward.1} parent=5 // pred_region
      // Predicated region
      $region21: #{distanceminimi_forward.1} parent=19 // pred_check
        %p119 = pneg %p42
      $region22: #{distanceminimi_forward.1} parent=19 // pred_check_branch
        %121 = sbr.rel (%p119) target = $region24
      $region23: #{distanceminimi_forward.1} parent=19 // pred_region
        %s122 = smul.u32 2, %s16
        %p123 = scmp.lt.s32.totalorder %s15, 1
        %s124 = scalar_select %p123, %s15, 1
        %p125 = scmp.lt.s32.totalorder %s122, 1
        %s126 = scalar_select %p125, %s122, 1
        %s127 = smul.addr %s124, 2
        %s128 = sadd.s32 %s126, %s127
        %s129 = smul.addr %s128, 4
        %s130 = scalar_lea.vmem %s0, %s129
        %s131 = smul.u32 2, %s16
      $region24: #{distanceminimi_forward.1} parent=19 // pred_fallthru
        _
    $region20: #{distanceminimi_forward.1} parent=5 // pred_fallthru
      _
    %p132 = scmp.le.s32.totalorder 1, %s8
    %p133 = scmp.lt.s32.totalorder %s8, 3
    %p134 = pnand %p132, %p133
    %p135 = pneg %p134
    // Predicated region
    $region25: #{distanceminimi_forward.1} parent=5 // pred_check
      _
    $region26: #{distanceminimi_forward.1} parent=5 // pred_check_branch
      %137 = sbr.rel (%p134) target = $region28
    $region27: #{distanceminimi_forward.1} parent=5 // pred_region
      %s138 = ssub.s32 %s8, 1
      %s139 = smul.u32 2, %s18
      %p140 = scmp.lt.s32.totalorder %s17, 1
      %s141 = scalar_select %p140, %s17, 1
      %p142 = scmp.lt.s32.totalorder %s139, 1
      %s143 = scalar_select %p142, %s139, 1
      %s144 = smul.addr %s141, 2
      %s145 = sadd.s32 %s143, %s144
      %s146 = smul.addr %s145, 4
      %s147 = scalar_lea.vmem %s0, %s146
      %p148 = pneg %p48
      %p149 = pneg %p45
      %p150 = pneg %p69
      %p151 = pneg %p66
      %p152 = pneg %p97
      %p153 = pneg %p94
      %s154 = smul.u32 2, %s18
      %p155 = scmp.lt.s32.totalorder %s17, 1
      %s156 = scalar_select %p155, %s17, 1
      %p157 = scmp.lt.s32.totalorder %s154, 1
      %s158 = scalar_select %p157, %s154, 1
      %s159 = smul.addr %s156, 2
      %s160 = sadd.s32 %s158, %s159
      %s161 = smul.addr %s160, 8
      %s162 = scalar_lea.vmem %s2, %s161
      %s163 = smul.u32 2, %s18
      %p164 = scmp.lt.s32.totalorder %s17, 1
      %s165 = scalar_select %p164, %s17, 1
      %p166 = scmp.lt.s32.totalorder %s163, 1
      %s167 = scalar_select %p166, %s163, 1
      %s168 = smul.addr %s165, 2
      %s169 = sadd.s32 %s167, %s168
      %s170 = smul.addr %s169, 4
      %s171 = scalar_lea.vmem %s0, %s170
      %s172 = smul.u32 2, %s18
      %s173 = smul.u32 2, %s18
      %p174 = scmp.lt.s32.totalorder %s17, 1
      %s175 = scalar_select %p174, %s17, 1
      %p176 = scmp.lt.s32.totalorder %s173, 1
      %s177 = scalar_select %p176, %s173, 1
      %s178 = smul.addr %s175, 2
      %s179 = sadd.s32 %s177, %s178
      %s180 = smul.addr %s179, 8
      %s181 = scalar_lea.vmem %s2, %s180
      %s182 = smul.u32 2, %s18
      %v183 = vld [vmem:[%s171] sm:$0xff]
      %v184 = vld [vmem:[%s1] sm:$0xff]
      %v186 = vcombine.high %v183, %v183
      %vm187 = vcmask 31744
      %v189 = vsel %vm187, %v184, 0
      %vm191 = vcmask 1043456
      %v192 = vsel %vm191, %v183, 0
      %v194 = vsel %vm191, %v186, 0
      %196 = vmatprep.subr.mxu0 %v194
      %197 = vmatpush1.msra.mxu0 %v192
      %198 = vmatprep.subr.mxu0 0.0
      %199 = vmatpush1.msra.mxu0 0.0
      %200 = vmatprep.subr.mxu0 0.0
      %201 = vmatpush1.msra.mxu0 0.0
      %202 = vmatprep.subr.mxu0 0.0
      %203 = vmatpush1.msra.mxu0 0.0
      %204 = vmatprep.subr.mxu0 0.0
      %205 = vmatpush1.msra.mxu0 0.0
      %206 = vmatprep.subr.mxu0 0.0
      %207 = vmatpush1.msra.mxu0 0.0
      %208 = vmatprep.subr.mxu0 0.0
      %209 = vmatpush1.msra.mxu0 0.0
      %210 = vmatprep.subr.mxu0 0.0
      %211 = vmatpush1.msra.mxu0 0.0
      %212 = vmatprep.subr.mxu0 0.0
      %213 = vmatpush1.msra.mxu0 0.0
      %214 = vmatprep.subr.mxu0 0.0
      %215 = vmatpush1.msra.mxu0 0.0
      %216 = vmatprep.subr.mxu0 0.0
      %217 = vmatpush1.msra.mxu0 0.0
      %218 = vmatprep.subr.mxu0 0.0
      %219 = vmatpush1.msra.mxu0 0.0
      %220 = vmatprep.subr.mxu0 0.0
      %221 = vmatpush1.msra.mxu0 0.0
      %222 = vmatprep.subr.mxu0 0.0
      %223 = vmatpush1.msra.mxu0 0.0
      %224 = vmatprep.subr.mxu0 0.0
      %225 = vmatpush1.msra.mxu0 0.0
      %226 = vmatprep.subr.mxu0 0.0
      %227 = vmatpush1.msra.mxu0 0.0
      %228 = vmatprep.subr.mxu0 0.0
      %229 = vmatpush1.msra.mxu0 0.0
      %230 = vmatprep.subr.mxu0 0.0
      %231 = vmatpush1.msra.mxu0 0.0
      %232 = vmatprep.subr.mxu0 0.0
      %233 = vmatpush1.msra.mxu0 0.0
      %234 = vmatprep.subr.mxu0 0.0
      %235 = vmatpush1.msra.mxu0 0.0
      %236 = vmatprep.subr.mxu0 0.0
      %237 = vmatpush1.msra.mxu0 0.0
      %238 = vmatprep.subr.mxu0 0.0
      %239 = vmatpush1.msra.mxu0 0.0
      %240 = vmatprep.subr.mxu0 0.0
      %241 = vmatpush1.msra.mxu0 0.0
      %242 = vmatprep.subr.mxu0 0.0
      %243 = vmatpush1.msra.mxu0 0.0
      %244 = vmatprep.subr.mxu0 0.0
      %245 = vmatpush1.msra.mxu0 0.0
      %246 = vmatprep.subr.mxu0 0.0
      %247 = vmatpush1.msra.mxu0 0.0
      %248 = vmatprep.subr.mxu0 0.0
      %249 = vmatpush1.msra.mxu0 0.0
      %250 = vmatprep.subr.mxu0 0.0
      %251 = vmatpush1.msra.mxu0 0.0
      %252 = vmatprep.subr.mxu0 0.0
      %253 = vmatpush1.msra.mxu0 0.0
      %254 = vmatprep.subr.mxu0 0.0
      %255 = vmatpush1.msra.mxu0 0.0
      %256 = vmatprep.subr.mxu0 0.0
      %257 = vmatpush1.msra.mxu0 0.0
      %258 = vmatprep.subr.mxu0 0.0
      %259 = vmatpush1.msra.mxu0 0.0
      %260 = vmatprep.mubr.f32.mxu0 0.0
      %261 = vmatmul.mubr.f32.gmra.mrb[0].mxu0 %v189
      %v262 = vpop.f32.mrb[0].mxu0
      %v263 = vadd.f32 0.0, %v262
      %v264 = vpop.f32.mrb[0].mxu0
      %v265 = vadd.f32 0.0, %v264
      %266 = vdwg.mxu0
      %v267 = vmul.f32 %v183, %v183
      %v269 = vcombine.high %v267, %v267
      %v271 = vsel %vm191, %v267, 0.0
      %v272 = vrot.slane %v271, 4
      %v273 = vadd.f32 %v271, %v272
      %v274 = vrot.slane %v273, 2
      %v275 = vadd.f32 %v273, %v274
      %v276 = vrot.slane %v275, 1
      %v277 = vadd.f32 %v275, %v276
      %v278 = vsel %vm191, %v269, 0.0
      %v279 = vrot.slane %v278, 4
      %v280 = vadd.f32 %v278, %v279
      %v281 = vrot.slane %v280, 2
      %v282 = vadd.f32 %v280, %v281
      %v283 = vrot.slane %v282, 1
      %v284 = vadd.f32 %v282, %v283
      %v285 = vmax.f32 %v277, 1.1754944e-38
      %v286 = vmax.f32 %v284, 1.1754944e-38
      %v287 = vrsqrt.pop %v285
      %v288 = vrsqrt.pop %v286
      %v289 = vmul.f32 %v263, %v287
      %v290 = vmul.f32 %v265, %v288
      %291 = vst [vmem:[%s181] sm:$0xff] %v289
      %292 = vst [vmem:[%s181 + $0x8] sm:$0xff] %v290
      %s293 = smul.u32 2, %s18
      %p294 = scmp.lt.s32.totalorder %s17, 1
      %s295 = scalar_select %p294, %s17, 1
      %p296 = scmp.lt.s32.totalorder %s293, 1
      %s297 = scalar_select %p296, %s293, 1
      %s298 = smul.addr %s295, 2
      %s299 = sadd.s32 %s297, %s298
      %s300 = smul.addr %s299, 8
      %s301 = scalar_lea.vmem %s2, %s300
      // Predicated region
      $region29: #{distanceminimi_forward.1} parent=27 // pred_check
        %p302 = pneg %p94
      $region30: #{distanceminimi_forward.1} parent=27 // pred_check_branch
        %304 = sbr.rel (%p302) target = $region32
      $region31: #{distanceminimi_forward.1} parent=27 // pred_region
        %s305 = smul.u32 2, %s18
      $region32: #{distanceminimi_forward.1} parent=27 // pred_fallthru
        _
    $region28: #{distanceminimi_forward.1} parent=5 // pred_fallthru
      _
    %p306 = scmp.le.s32.totalorder 2, %s8
    // Predicated region
    $region33: #{distanceminimi_forward.1} parent=5 // pred_check
      %p307 = pneg %p306
    $region34: #{distanceminimi_forward.1} parent=5 // pred_check_branch
      %309 = sbr.rel (%p307) target = $region36
    $region35: #{distanceminimi_forward.1} parent=5 // pred_region
      %s310 = ssub.s32 %s8, 2
      // Predicated region
      $region37: #{distanceminimi_forward.1} parent=35 // pred_check
        %p311 = pneg %p100
      $region38: #{distanceminimi_forward.1} parent=35 // pred_check_branch
        %313 = sbr.rel (%p311) target = $region40
      $region39: #{distanceminimi_forward.1} parent=35 // pred_region
        %s314 = smul.u32 2, %s20
        %p315 = scmp.lt.s32.totalorder %s19, 1
        %s316 = scalar_select %p315, %s19, 1
        %p317 = scmp.lt.s32.totalorder %s314, 1
        %s318 = scalar_select %p317, %s314, 1
        %s319 = smul.addr %s316, 2
        %s320 = sadd.s32 %s318, %s319
        %s321 = smul.addr %s320, 8
        %s322 = scalar_lea.vmem %s2, %s321
      $region40: #{distanceminimi_forward.1} parent=35 // pred_fallthru
        _
    $region36: #{distanceminimi_forward.1} parent=5 // pred_fallthru
      _
  $region6: #{distanceminimi_forward.1} parent=0 // loop_footer
    %s12 = sadd.s32 1, %s8
  $region7: #{distanceminimi_forward.1} parent=0 // loop_footer_branch
    %7 = sbr.rel target = $region3
  $region8: #{distanceminimi_forward.1} parent=0 // loop_exit
    _

</llo_original>
